<compile_context>
chip_gen: v7x
topology: tpu7x:2x2x1
jax: 0.10.0
libtpu: 0.0.40
codegen_flags: <defaults>
</compile_context>

<pallas_src>
import jax
import jax.numpy as jnp
from jax.experimental import pallas as pl
from jax.experimental.pallas import tpu as pltpu


def _round_up(v, m):
    return (v + m - 1) // m * m


def _sublane_granule(dtype):
    """Packed sublane granule: 8 rows for 32-bit, 16 for bf16, 32 for int8/fp8."""
    isz = jnp.dtype(dtype).itemsize
    return max(8, 8 * (4 // max(isz, 1)))


def _vmem_capacity_bytes():
    try:
        return int(pltpu.get_tpu_info().vmem_capacity_bytes)
    except Exception:
        return 64 * 1024 * 1024          # conservative (v7x-safe) fallback


def _pick_hw_tile(hw, resident_bytes_per_lane, budget_bytes, lane_cap):
    """Largest lane tile (multiple of 128, <= hw, <= lane_cap) whose resident
    VMEM working set stays under budget.  Ragged last block via cdiv grid."""
    if hw < 128:
        return hw                        # lane dim equals the full array dim
    t = min(lane_cap, (hw // 128) * 128)
    while t > 128 and resident_bytes_per_lane * t > budget_bytes:
        t -= 128
    return max(t, 128)


def _make_fusion_kernel(overlaps):
    """Kernel closed over the static per-feature overlap widths."""
    num_feats = len(overlaps)

    def kernel(x_ref, *rest):
        a_refs = rest[:num_feats]
        o_ref = rest[num_feats]
        c = x_ref.shape[0]                       # channels of x (static)

        # Single accumulator = the output VMEM block (bounds temporaries to
        # one tile).  The HBM writeback still happens exactly once per block.
        o_ref[...] = x_ref[...].astype(o_ref.dtype)

        for a_ref, m in zip(a_refs, overlaps):
            a = a_ref[...]                       # (m_pad, T) tile
            if m == c:
                if a.shape[0] == c:              # exact full-width overlap
                    o_ref[...] += a.astype(o_ref.dtype)
                else:                            # padded rows were DMA'd; ignore them
                    o_ref[...] += a[:c, :].astype(o_ref.dtype)
            else:                                # feature narrower than x
                o_ref[:m, :] += a[:m, :].astype(o_ref.dtype)

    return kernel


class WeightedFeatureFusion:
    """JAX/Pallas port of utils/layers.py::WeightedFeatureFusion (no learned weights)."""

    def __init__(self, layers):
        self.layers = layers
        self.n = len(layers) + 1  # number of tensors fused (x + features)

    def __call__(self, x, outputs):
        N, C, H, W = x.shape
        HW = H * W
        feats = [outputs[i] for i in self.layers]
        if not feats:
            return x

        # Every fused feature must match x's batch & spatial dims.
        for a in feats:
            assert a.shape[0] == N and a.shape[2:] == (H, W), (
                f"feature shape {a.shape} incompatible with x shape {x.shape}")

        # TODO(synk): mixed-dtype inputs are accumulated in x.dtype (no type
        # promotion like pure jnp would do) — matches the common all-same-dtype case.
        out_dtype = x.dtype
        x_isz = jnp.dtype(x.dtype).itemsize

        x2 = x.reshape(N, C, HW)                 # layout plumbing only
        feats2, overlaps, pad_rows = [], [], []
        for a in feats:
            na = a.shape[1]
            m = min(C, na)                       # overlapping channels actually added
            granule = _sublane_granule(a.dtype)
            # Rows DMA'd per block: pad the overlap to the sublane granule
            # instead of slicing in the wrapper (avoids an extra HBM copy).
            m_pad = min(na, _round_up(m, granule))
            feats2.append(a.reshape(N, na, HW))
            overlaps.append(m)
            pad_rows.append(m_pad)

        # VMEM estimate per lane-column: double-buffered DMA tiles + one temp,
        # using each buffer's own itemsize.
        dma_per_lane = C * x_isz + C * jnp.dtype(out_dtype).itemsize
        dma_per_lane += sum(mp * jnp.dtype(a.dtype).itemsize
                            for mp, a in zip(pad_rows, feats2))
        resident_per_lane = 2 * dma_per_lane + C * max(x_isz, 4)

        # Generation-aware budget / tile cap.
        vmem_cap = _vmem_capacity_bytes()
        budget = int(0.42 * vmem_cap)            # ~54 MiB on 128 MiB parts, ~27 MiB on v7x
        lane_cap = 8192 if vmem_cap >= (100 << 20) else 2048

        T = _pick_hw_tile(HW, resident_per_lane, budget, lane_cap)

        # Megacore occupancy: keep >= 4 parallel grid steps when possible so a
        # 2-TensorCore part (v7x) never idles a core.
        while T > 128 and N * pl.cdiv(HW, T) < 4:
            new_t = max(128, (T // 2) // 128 * 128)
            if new_t == T:
                break
            T = new_t

        grid = (N, pl.cdiv(HW, T))               # ragged last block allowed

        kernel = _make_fusion_kernel(tuple(overlaps))
        idx = lambda b, j: (b, 0, j)

        in_specs = [pl.BlockSpec((pl.Squeezed(), C, T), idx)]
        for mp in pad_rows:
            in_specs.append(pl.BlockSpec((pl.Squeezed(), mp, T), idx))
        out_spec = pl.BlockSpec((pl.Squeezed(), C, T), idx)

        # Scoped-VMEM request: actual need + headroom, clamped below physical.
        need = resident_per_lane * T + (2 << 20)
        vmem_limit = int(min(max(need, 32 << 20), vmem_cap - (8 << 20)))

        cost = pl.CostEstimate(
            flops=N * HW * sum(overlaps),
            transcendentals=0,
            bytes_accessed=N * HW * dma_per_lane,
        )

        out = pl.pallas_call(
            kernel,
            out_shape=jax.ShapeDtypeStruct((N, C, HW), out_dtype),
            grid_spec=pltpu.PrefetchScalarGridSpec(
                num_scalar_prefetch=0,
                grid=grid,
                in_specs=in_specs,
                out_specs=out_spec,
            ),
            compiler_params=pltpu.CompilerParams(
                dimension_semantics=("parallel", "parallel"),
                vmem_limit_bytes=vmem_limit,
            ),
            cost_estimate=cost,
        )(x2, *feats2)
        return out.reshape(N, C, H, W)


def reference(x, outputs, layers):
    """Pure-JAX reference matching the PyTorch forward exactly."""
    nx = x.shape[1]
    for i in range(len(layers)):
        a = outputs[layers[i]]
        na = a.shape[1]
        if nx == na:
            x = x + a
        elif nx > na:
            x = x.at[:, :na].add(a)
        else:
            x = x + a[:, :nx]
    return x


if __name__ == "__main__":
    key = jax.random.PRNGKey(0)
    N, C, H, W = 2, 8, 16, 16
    ks = jax.random.split(key, 6)

    x = jax.random.normal(ks[0], (N, C, H, W), jnp.float32)
    # Synthetic "outputs" list of prior-layer feature maps (NCHW).
    outputs = [
        jax.random.normal(ks[1], (N, 16, H, W), jnp.float32),
        jax.random.normal(ks[2], (N, 12, H, W), jnp.float32),  # na > nx branch
        jax.random.normal(ks[3], (N, 4, H, W), jnp.float32),   # na < nx branch
        jax.random.normal(ks[4], (N, 8, H, W), jnp.float32),   # na == nx branch
        jax.random.normal(ks[5], (N, 16, H, W), jnp.float32),
    ]
    layers = [-2, -3, -4]  # outputs[-2] (C=8), [-3] (C=4), [-4] (C=12)

    module = WeightedFeatureFusion(layers)
    y = module(x, outputs)
    jax.block_until_ready(y)

    y_ref = reference(x, outputs, layers)
    assert y.shape == y_ref.shape and y.dtype == y_ref.dtype
    assert jnp.allclose(y, y_ref, atol=1e-5, rtol=1e-5)
    print("KERNEL_OK")
</pallas_src>

<mosaic_0001>
module attributes {stable_mosaic.version = 11 : i64} {
  func.func @kernel(%arg0: i32, %arg1: i32, %arg2: memref<1x8x128xf32, #tpu.memory_space<vmem>>, %arg3: memref<1x8x128xf32, #tpu.memory_space<vmem>>, %arg4: memref<1x4x128xf32, #tpu.memory_space<vmem>>, %arg5: memref<1x8x128xf32, #tpu.memory_space<vmem>>, %arg6: memref<1x8x128xf32, #tpu.memory_space<vmem>>) attributes {dimension_semantics = [#tpu.dimension_semantics<parallel>, #tpu.dimension_semantics<parallel>], iteration_bounds = array<i64: 2, 2>, scalar_prefetch = 0 : i64, scratch_operands = 0 : i64, tpu.core_type = #tpu.core_type<tc>, window_params = [{transform_indices = @transform_0, window_bounds = array<i64: 1, 8, 128>}, {transform_indices = @transform_1, window_bounds = array<i64: 1, 8, 128>}, {transform_indices = @transform_2, window_bounds = array<i64: 1, 4, 128>}, {transform_indices = @transform_3, window_bounds = array<i64: 1, 8, 128>}, {transform_indices = @transform_4, window_bounds = array<i64: 1, 8, 128>}]} {
    %c0 = arith.constant 0 : index
    %c0_0 = arith.constant 0 : index
    %c0_1 = arith.constant 0 : index
    %0 = vector.load %arg2[%c0, %c0_0, %c0_1] : memref<1x8x128xf32, #tpu.memory_space<vmem>>, vector<1x8x128xf32>
    %1 = vector.shape_cast %0 : vector<1x8x128xf32> to vector<8x128xf32>
    %c0_2 = arith.constant 0 : index
    %c0_3 = arith.constant 0 : index
    %c0_4 = arith.constant 0 : index
    %2 = vector.load %arg6[%c0_2, %c0_3, %c0_4] : memref<1x8x128xf32, #tpu.memory_space<vmem>>, vector<1x8x128xf32>
    %3 = vector.shape_cast %2 : vector<1x8x128xf32> to vector<8x128xf32>
    %4 = vector.shape_cast %1 : vector<8x128xf32> to vector<1x8x128xf32>
    tpu.vector_store %arg6[%c0_2, %c0_3, %c0_4], %4 {strides = array<i32>} : memref<1x8x128xf32, #tpu.memory_space<vmem>>, vector<1x8x128xf32>,
    %c0_5 = arith.constant 0 : index
    %c0_6 = arith.constant 0 : index
    %c0_7 = arith.constant 0 : index
    %5 = vector.load %arg3[%c0_5, %c0_6, %c0_7] : memref<1x8x128xf32, #tpu.memory_space<vmem>>, vector<1x8x128xf32>
    %6 = vector.shape_cast %5 : vector<1x8x128xf32> to vector<8x128xf32>
    %c0_8 = arith.constant 0 : index
    %c0_9 = arith.constant 0 : index
    %c0_10 = arith.constant 0 : index
    %7 = vector.load %arg6[%c0_8, %c0_9, %c0_10] : memref<1x8x128xf32, #tpu.memory_space<vmem>>, vector<1x8x128xf32>
    %8 = vector.shape_cast %7 : vector<1x8x128xf32> to vector<8x128xf32>
    %9 = arith.addf %8, %6 : vector<8x128xf32>
    %c0_11 = arith.constant 0 : index
    %c0_12 = arith.constant 0 : index
    %c0_13 = arith.constant 0 : index
    %10 = vector.load %arg6[%c0_11, %c0_12, %c0_13] : memref<1x8x128xf32, #tpu.memory_space<vmem>>, vector<1x8x128xf32>
    %11 = vector.shape_cast %10 : vector<1x8x128xf32> to vector<8x128xf32>
    %12 = vector.shape_cast %9 : vector<8x128xf32> to vector<1x8x128xf32>
    tpu.vector_store %arg6[%c0_11, %c0_12, %c0_13], %12 {strides = array<i32>} : memref<1x8x128xf32, #tpu.memory_space<vmem>>, vector<1x8x128xf32>,
    %c0_14 = arith.constant 0 : index
    %c0_15 = arith.constant 0 : index
    %c0_16 = arith.constant 0 : index
    %13 = vector.load %arg4[%c0_14, %c0_15, %c0_16] : memref<1x4x128xf32, #tpu.memory_space<vmem>>, vector<1x4x128xf32>
    %14 = vector.shape_cast %13 : vector<1x4x128xf32> to vector<4x128xf32>
    %c0_17 = arith.constant 0 : index
    %c0_18 = arith.constant 0 : index
    %c0_19 = arith.constant 0 : index
    %15 = vector.load %arg6[%c0_17, %c0_18, %c0_19] : memref<1x8x128xf32, #tpu.memory_space<vmem>>, vector<1x4x128xf32>
    %16 = vector.shape_cast %15 : vector<1x4x128xf32> to vector<4x128xf32>
    %17 = arith.addf %16, %14 : vector<4x128xf32>
    %c0_20 = arith.constant 0 : index
    %c0_21 = arith.constant 0 : index
    %c0_22 = arith.constant 0 : index
    %18 = vector.load %arg6[%c0_20, %c0_21, %c0_22] : memref<1x8x128xf32, #tpu.memory_space<vmem>>, vector<1x4x128xf32>
    %19 = vector.shape_cast %18 : vector<1x4x128xf32> to vector<4x128xf32>
    %20 = vector.shape_cast %17 : vector<4x128xf32> to vector<1x4x128xf32>
    tpu.vector_store %arg6[%c0_20, %c0_21, %c0_22], %20 {strides = array<i32>} : memref<1x8x128xf32, #tpu.memory_space<vmem>>, vector<1x4x128xf32>,
    %c0_23 = arith.constant 0 : index
    %c0_24 = arith.constant 0 : index
    %c0_25 = arith.constant 0 : index
    %21 = vector.load %arg5[%c0_23, %c0_24, %c0_25] : memref<1x8x128xf32, #tpu.memory_space<vmem>>, vector<1x8x128xf32>
    %22 = vector.shape_cast %21 : vector<1x8x128xf32> to vector<8x128xf32>
    %c0_26 = arith.constant 0 : index
    %c0_27 = arith.constant 0 : index
    %c0_28 = arith.constant 0 : index
    %23 = vector.load %arg6[%c0_26, %c0_27, %c0_28] : memref<1x8x128xf32, #tpu.memory_space<vmem>>, vector<1x8x128xf32>
    %24 = vector.shape_cast %23 : vector<1x8x128xf32> to vector<8x128xf32>
    %25 = arith.addf %24, %22 : vector<8x128xf32>
    %c0_29 = arith.constant 0 : index
    %c0_30 = arith.constant 0 : index
    %c0_31 = arith.constant 0 : index
    %26 = vector.load %arg6[%c0_29, %c0_30, %c0_31] : memref<1x8x128xf32, #tpu.memory_space<vmem>>, vector<1x8x128xf32>
    %27 = vector.shape_cast %26 : vector<1x8x128xf32> to vector<8x128xf32>
    %28 = vector.shape_cast %25 : vector<8x128xf32> to vector<1x8x128xf32>
    tpu.vector_store %arg6[%c0_29, %c0_30, %c0_31], %28 {strides = array<i32>} : memref<1x8x128xf32, #tpu.memory_space<vmem>>, vector<1x8x128xf32>,
    return
  }
  func.func @transform_0(%arg0: i32, %arg1: i32) -> (i32, i32, i32) {
    %c0_i32 = arith.constant 0 : i32
    %c0_i32_0 = arith.constant 0 : i32
    return %arg0, %c0_i32, %arg1 : i32, i32, i32
  }
  func.func @transform_1(%arg0: i32, %arg1: i32) -> (i32, i32, i32) {
    %c0_i32 = arith.constant 0 : i32
    %c0_i32_0 = arith.constant 0 : i32
    return %arg0, %c0_i32, %arg1 : i32, i32, i32
  }
  func.func @transform_2(%arg0: i32, %arg1: i32) -> (i32, i32, i32) {
    %c0_i32 = arith.constant 0 : i32
    %c0_i32_0 = arith.constant 0 : i32
    return %arg0, %c0_i32, %arg1 : i32, i32, i32
  }
  func.func @transform_3(%arg0: i32, %arg1: i32) -> (i32, i32, i32) {
    %c0_i32 = arith.constant 0 : i32
    %c0_i32_0 = arith.constant 0 : i32
    return %arg0, %c0_i32, %arg1 : i32, i32, i32
  }
  func.func @transform_4(%arg0: i32, %arg1: i32) -> (i32, i32, i32) {
    %c0_i32 = arith.constant 0 : i32
    %c0_i32_0 = arith.constant 0 : i32
    return %arg0, %c0_i32, %arg1 : i32, i32, i32
  }
}

</mosaic_0001>

<llo_original>
// kernel: tpu_custom_call.1
$region0: #{tpu_custom_call.1}
  #allocation0 [shape = 'u32[]', space=smem, size = 0x4, offset = 0x4, fixed_abs, tag = 'smem constant byte address 0x4 - core index']
  #allocation1 [shape = 'u32[144,128]{1,0:T(1,128)}', space=vmem, size = 0x12000, scoped, tag = 'internal scratch']
  %s0 = inlined_call_operand.vmem [shape: f32[2,8,256], index: 0, kind: input, shape index: {}]
  %s1 = inlined_call_operand.vmem [shape: f32[2,8,256], index: 1, kind: input, shape index: {}]
  %s2 = inlined_call_operand.vmem [shape: f32[2,4,256], index: 2, kind: input, shape index: {}]
  %s3 = inlined_call_operand.vmem [shape: f32[2,12,256], index: 3, kind: input, shape index: {}]
  %s4 = inlined_call_operand.hbm [shape: f32[2,8,256], index: 4, kind: output, shape index: {}]
  %s5 = sld [smem:[#allocation0]]
  $region49: #{tpu_custom_call.1} parent=0
    _
  %s7 = ssub.s32 1, %s5
  %s8 = scalar_select 0, %s7, %s5
  $region1: #{tpu_custom_call.1} parent=0
    #allocation2 [shape = 'u8[8192]{0}', space=vmem, size = 0x2000, scoped, tag = 'output window, operand 0']
    #allocation3 [shape = 's32[2]{0}', space=sflag, size = 0x8, scoped, tag = 'scoped memory for tpu_custom_call.1']
    %9 = vsyncpa [#allocation3], 0
    %s10 = scalar_lea.sflag [#allocation3], 1
    %11 = vsyncpa %s10, 0
    loop: start=0, step=1, limit=6
    $region2: #{tpu_custom_call.1} parent=1 // loop_pre_header
      _
    $region3: #{tpu_custom_call.1} parent=1 // loop_header
      %s13 = sphi 0, %s17
      %p14 = scmp.ge.s32.totalorder %s13, 6
      %s20 = sphi 0, %s32
      %s21 = sphi 0, %s28
      %s22 = sphi 0, %s20
      %s23 = sphi 0, %s21
      %s24 = sphi 0, %s22
      %s25 = sphi 0, %s23
      %s37 = sphi 0, %s39
      %s40 = sphi 0, %s37
      %s41 = sphi 0, %s40
      %s57 = sphi 0, %s41
      %s65 = sphi 0, %s67
      %s68 = sphi 0, %s65
      %s69 = sphi 0, %s68
      %s85 = sphi 0, %s69
      %s93 = sphi 0, %s95
      %s96 = sphi 0, %s93
      %s97 = sphi 0, %s96
      %s113 = sphi 0, %s97
      %s121 = sphi 0, %s123
      %s124 = sphi 0, %s121
      %s125 = sphi 0, %s124
      %s141 = sphi 0, %s125
      %s149 = sphi 0, %s151
      %s152 = sphi 0, %s149
      %s153 = sphi 0, %s152
      %s169 = sphi 0, %s153
    $region4: #{tpu_custom_call.1} parent=1 // loop_header_branch
      %16 = sbr.rel (%p14) target = $region8
    $region5: #{tpu_custom_call.1} parent=1 // loop_body
      %s18 = ssub.s32 %s13, 1
      %s19 = ssub.s32 %s13, 2
      %s26 = sadd.s32 1, %s21
      %p27 = scmp.ge.s32.totalorder %s26, 2
      %s28 = scalar_select %p27, 0, %s26
      %s29 = sadd.s32 1, %s20
      %s30 = scalar_select %p27, %s29, %s20
      %p31 = scmp.ge.s32.totalorder %s30, 2
      %s32 = scalar_select %p31, 0, %s30
      %s33 = ssub.s32 %s20, %s32
      %s34 = ssub.s32 %s21, %s28
      %s35 = sor.u32 %s33, %s34
      %p36 = scmp.eq.s32.totalorder %s35, 0
      %s38 = sadd.s32 %s37, 1
      %s39 = scalar_select %p36, %s37, %s38
      %p42 = pneg %p36
      %p43 = scmp.eq.s32.totalorder %s13, 3
      %p44 = por %p42, %p43
      %p45 = scmp.ne.s32.totalorder %s37, %s40
      %p46 = scmp.eq.s32.totalorder %s13, 0
      %p47 = por %p45, %p46
      %p48 = scmp.ne.s32.totalorder %s37, %s40
      %p49 = scmp.eq.s32.totalorder %s18, 3
      %p50 = por %p48, %p49
      %p51 = scmp.ne.s32.totalorder %s40, %s41
      %p52 = scmp.eq.s32.totalorder %s18, 0
      %p53 = por %p51, %p52
      %p54 = scmp.ne.s32.totalorder %s40, %s41
      %p55 = scmp.eq.s32.totalorder %s19, 3
      %p56 = por %p54, %p55
      %p58 = scmp.ne.s32.totalorder %s41, %s57
      %p59 = scmp.eq.s32.totalorder %s19, 0
      %p60 = por %p58, %p59
      %s61 = ssub.s32 %s20, %s32
      %s62 = ssub.s32 %s21, %s28
      %s63 = sor.u32 %s61, %s62
      %p64 = scmp.eq.s32.totalorder %s63, 0
      %s66 = sadd.s32 %s65, 1
      %s67 = scalar_select %p64, %s65, %s66
      %p70 = pneg %p64
      %p71 = scmp.eq.s32.totalorder %s13, 3
      %p72 = por %p70, %p71
      %p73 = scmp.ne.s32.totalorder %s65, %s68
      %p74 = scmp.eq.s32.totalorder %s13, 0
      %p75 = por %p73, %p74
      %p76 = scmp.ne.s32.totalorder %s65, %s68
      %p77 = scmp.eq.s32.totalorder %s18, 3
      %p78 = por %p76, %p77
      %p79 = scmp.ne.s32.totalorder %s68, %s69
      %p80 = scmp.eq.s32.totalorder %s18, 0
      %p81 = por %p79, %p80
      %p82 = scmp.ne.s32.totalorder %s68, %s69
      %p83 = scmp.eq.s32.totalorder %s19, 3
      %p84 = por %p82, %p83
      %p86 = scmp.ne.s32.totalorder %s69, %s85
      %p87 = scmp.eq.s32.totalorder %s19, 0
      %p88 = por %p86, %p87
      %s89 = ssub.s32 %s20, %s32
      %s90 = ssub.s32 %s21, %s28
      %s91 = sor.u32 %s89, %s90
      %p92 = scmp.eq.s32.totalorder %s91, 0
      %s94 = sadd.s32 %s93, 1
      %s95 = scalar_select %p92, %s93, %s94
      %p98 = pneg %p92
      %p99 = scmp.eq.s32.totalorder %s13, 3
      %p100 = por %p98, %p99
      %p101 = scmp.ne.s32.totalorder %s93, %s96
      %p102 = scmp.eq.s32.totalorder %s13, 0
      %p103 = por %p101, %p102
      %p104 = scmp.ne.s32.totalorder %s93, %s96
      %p105 = scmp.eq.s32.totalorder %s18, 3
      %p106 = por %p104, %p105
      %p107 = scmp.ne.s32.totalorder %s96, %s97
      %p108 = scmp.eq.s32.totalorder %s18, 0
      %p109 = por %p107, %p108
      %p110 = scmp.ne.s32.totalorder %s96, %s97
      %p111 = scmp.eq.s32.totalorder %s19, 3
      %p112 = por %p110, %p111
      %p114 = scmp.ne.s32.totalorder %s97, %s113
      %p115 = scmp.eq.s32.totalorder %s19, 0
      %p116 = por %p114, %p115
      %s117 = ssub.s32 %s20, %s32
      %s118 = ssub.s32 %s21, %s28
      %s119 = sor.u32 %s117, %s118
      %p120 = scmp.eq.s32.totalorder %s119, 0
      %s122 = sadd.s32 %s121, 1
      %s123 = scalar_select %p120, %s121, %s122
      %p126 = pneg %p120
      %p127 = scmp.eq.s32.totalorder %s13, 3
      %p128 = por %p126, %p127
      %p129 = scmp.ne.s32.totalorder %s121, %s124
      %p130 = scmp.eq.s32.totalorder %s13, 0
      %p131 = por %p129, %p130
      %p132 = scmp.ne.s32.totalorder %s121, %s124
      %p133 = scmp.eq.s32.totalorder %s18, 3
      %p134 = por %p132, %p133
      %p135 = scmp.ne.s32.totalorder %s124, %s125
      %p136 = scmp.eq.s32.totalorder %s18, 0
      %p137 = por %p135, %p136
      %p138 = scmp.ne.s32.totalorder %s124, %s125
      %p139 = scmp.eq.s32.totalorder %s19, 3
      %p140 = por %p138, %p139
      %p142 = scmp.ne.s32.totalorder %s125, %s141
      %p143 = scmp.eq.s32.totalorder %s19, 0
      %p144 = por %p142, %p143
      %s145 = ssub.s32 %s20, %s32
      %s146 = ssub.s32 %s21, %s28
      %s147 = sor.u32 %s145, %s146
      %p148 = scmp.eq.s32.totalorder %s147, 0
      %s150 = sadd.s32 %s149, 1
      %s151 = scalar_select %p148, %s149, %s150
      %p154 = pneg %p148
      %p155 = scmp.eq.s32.totalorder %s13, 3
      %p156 = por %p154, %p155
      %p157 = scmp.ne.s32.totalorder %s149, %s152
      %p158 = scmp.eq.s32.totalorder %s13, 0
      %p159 = por %p157, %p158
      %p160 = scmp.ne.s32.totalorder %s149, %s152
      %p161 = scmp.eq.s32.totalorder %s18, 3
      %p162 = por %p160, %p161
      %p163 = scmp.ne.s32.totalorder %s152, %s153
      %p164 = scmp.eq.s32.totalorder %s18, 0
      %p165 = por %p163, %p164
      %p166 = scmp.ne.s32.totalorder %s152, %s153
      %p167 = scmp.eq.s32.totalorder %s19, 3
      %p168 = por %p166, %p167
      %p170 = scmp.ne.s32.totalorder %s153, %s169
      %p171 = scmp.eq.s32.totalorder %s19, 0
      %p172 = por %p170, %p171
      %p173 = scmp.le.s32.totalorder 1, %s13
      %p174 = scmp.lt.s32.totalorder %s13, 5
      %p175 = pnand %p173, %p174
      %p176 = pneg %p175
      // Predicated region
      $region9: #{tpu_custom_call.1} parent=5 // pred_check
        _
      $region10: #{tpu_custom_call.1} parent=5 // pred_check_branch
        %178 = sbr.rel (%p175) target = $region12
      $region11: #{tpu_custom_call.1} parent=5 // pred_region
        %s179 = ssub.s32 %s13, 1
      $region12: #{tpu_custom_call.1} parent=5 // pred_fallthru
        _
      %p180 = scmp.lt.s32.totalorder %s13, 4
      // Predicated region
      $region13: #{tpu_custom_call.1} parent=5 // pred_check
        %p181 = pneg %p180
      $region14: #{tpu_custom_call.1} parent=5 // pred_check_branch
        %183 = sbr.rel (%p181) target = $region16
      $region15: #{tpu_custom_call.1} parent=5 // pred_region
        // Predicated region
        $region17: #{tpu_custom_call.1} parent=15 // pred_check
          %p184 = pneg %p47
        $region18: #{tpu_custom_call.1} parent=15 // pred_check_branch
          %186 = sbr.rel (%p184) target = $region20
        $region19: #{tpu_custom_call.1} parent=15 // pred_region
          %p187 = scmp.lt.s32.totalorder %s20, 1
          %s188 = scalar_select %p187, %s20, 1
          %p189 = scmp.lt.s32.totalorder %s21, 1
          %s190 = scalar_select %p189, %s21, 1
          %s191 = smul.addr %s188, 2
          %s192 = sadd.s32 %s190, %s191
          %s193 = smul.addr %s192, 8
          %s194 = scalar_lea.vmem %s0, %s193
        $region20: #{tpu_custom_call.1} parent=15 // pred_fallthru
          _
        // Predicated region
        $region21: #{tpu_custom_call.1} parent=15 // pred_check
          %p195 = pneg %p75
        $region22: #{tpu_custom_call.1} parent=15 // pred_check_branch
          %197 = sbr.rel (%p195) target = $region24
        $region23: #{tpu_custom_call.1} parent=15 // pred_region
          %p198 = scmp.lt.s32.totalorder %s20, 1
          %s199 = scalar_select %p198, %s20, 1
          %p200 = scmp.lt.s32.totalorder %s21, 1
          %s201 = scalar_select %p200, %s21, 1
          %s202 = smul.addr %s199, 2
          %s203 = sadd.s32 %s201, %s202
          %s204 = smul.addr %s203, 8
          %s205 = scalar_lea.vmem %s1, %s204
        $region24: #{tpu_custom_call.1} parent=15 // pred_fallthru
          _
        // Predicated region
        $region25: #{tpu_custom_call.1} parent=15 // pred_check
          %p206 = pneg %p103
        $region26: #{tpu_custom_call.1} parent=15 // pred_check_branch
          %208 = sbr.rel (%p206) target = $region28
        $region27: #{tpu_custom_call.1} parent=15 // pred_region
          %p209 = scmp.lt.s32.totalorder %s20, 1
          %s210 = scalar_select %p209, %s20, 1
          %p211 = scmp.lt.s32.totalorder %s21, 1
          %s212 = scalar_select %p211, %s21, 1
          %s213 = smul.addr %s210, 2
          %s214 = sadd.s32 %s212, %s213
          %s215 = smul.addr %s214, 4
          %s216 = scalar_lea.vmem %s2, %s215
        $region28: #{tpu_custom_call.1} parent=15 // pred_fallthru
          _
        // Predicated region
        $region29: #{tpu_custom_call.1} parent=15 // pred_check
          %p217 = pneg %p131
        $region30: #{tpu_custom_call.1} parent=15 // pred_check_branch
          %219 = sbr.rel (%p217) target = $region32
        $region31: #{tpu_custom_call.1} parent=15 // pred_region
          %p220 = scmp.lt.s32.totalorder %s20, 1
          %s221 = scalar_select %p220, %s20, 1
          %p222 = scmp.lt.s32.totalorder %s21, 1
          %s223 = scalar_select %p222, %s21, 1
          %s224 = smul.addr %s221, 4
          %s225 = sadd.s32 %s223, %s224
          %s226 = smul.addr %s225, 8
          %s227 = scalar_lea.vmem %s3, %s226
        $region32: #{tpu_custom_call.1} parent=15 // pred_fallthru
          _
      $region16: #{tpu_custom_call.1} parent=5 // pred_fallthru
        _
      %p228 = scmp.le.s32.totalorder 1, %s13
      %p229 = scmp.lt.s32.totalorder %s13, 5
      %p230 = pnand %p228, %p229
      %p231 = pneg %p230
      // Predicated region
      $region33: #{tpu_custom_call.1} parent=5 // pred_check
        _
      $region34: #{tpu_custom_call.1} parent=5 // pred_check_branch
        %233 = sbr.rel (%p230) target = $region36
      $region35: #{tpu_custom_call.1} parent=5 // pred_region
        %s234 = ssub.s32 %s13, 1
        %p235 = scmp.lt.s32.totalorder %s22, 1
        %s236 = scalar_select %p235, %s22, 1
        %p237 = scmp.lt.s32.totalorder %s23, 1
        %s238 = scalar_select %p237, %s23, 1
        %s239 = smul.addr %s236, 2
        %s240 = sadd.s32 %s238, %s239
        %s241 = smul.addr %s240, 8
        %s242 = scalar_lea.vmem %s0, %s241
        %p243 = pneg %p53
        %p244 = pneg %p50
        %p245 = scmp.lt.s32.totalorder %s22, 1
        %s246 = scalar_select %p245, %s22, 1
        %p247 = scmp.lt.s32.totalorder %s23, 1
        %s248 = scalar_select %p247, %s23, 1
        %s249 = smul.addr %s246, 2
        %s250 = sadd.s32 %s248, %s249
        %s251 = smul.addr %s250, 8
        %s252 = scalar_lea.vmem %s1, %s251
        %p253 = pneg %p81
        %p254 = pneg %p78
        %p255 = scmp.lt.s32.totalorder %s22, 1
        %s256 = scalar_select %p255, %s22, 1
        %p257 = scmp.lt.s32.totalorder %s23, 1
        %s258 = scalar_select %p257, %s23, 1
        %s259 = smul.addr %s256, 2
        %s260 = sadd.s32 %s258, %s259
        %s261 = smul.addr %s260, 4
        %s262 = scalar_lea.vmem %s2, %s261
        %p263 = pneg %p109
        %p264 = pneg %p106
        %p265 = scmp.lt.s32.totalorder %s22, 1
        %s266 = scalar_select %p265, %s22, 1
        %p267 = scmp.lt.s32.totalorder %s23, 1
        %s268 = scalar_select %p267, %s23, 1
        %s269 = smul.addr %s266, 4
        %s270 = sadd.s32 %s268, %s269
        %s271 = smul.addr %s270, 8
        %s272 = scalar_lea.vmem %s3, %s271
        %p273 = pneg %p137
        %p274 = pneg %p134
        %p275 = pneg %p165
        %p276 = pneg %p162
        %s277 = sand.u32 %s152, 1
        %s278 = scalar_lea.sflag [#allocation3], %s277
        %s279 = sand.u32 %s152, 1
        %s280 = smul.addr %s279, 8
        %s281 = scalar_lea.vmem [#allocation2], %s280
        %p282 = scmp.lt.s32.totalorder %s22, 1
        %s283 = scalar_select %p282, %s22, 1
        %p284 = scmp.lt.s32.totalorder %s23, 1
        %s285 = scalar_select %p284, %s23, 1
        %s286 = smul.addr %s283, 2
        %s287 = sadd.s32 %s285, %s286
        %s288 = smul.addr %s287, 8
        %s289 = scalar_lea.vmem %s0, %s288
        %p290 = scmp.lt.s32.totalorder %s22, 1
        %s291 = scalar_select %p290, %s22, 1
        %p292 = scmp.lt.s32.totalorder %s23, 1
        %s293 = scalar_select %p292, %s23, 1
        %s294 = smul.addr %s291, 2
        %s295 = sadd.s32 %s293, %s294
        %s296 = smul.addr %s295, 8
        %s297 = scalar_lea.vmem %s1, %s296
        %p298 = scmp.lt.s32.totalorder %s22, 1
        %s299 = scalar_select %p298, %s22, 1
        %p300 = scmp.lt.s32.totalorder %s23, 1
        %s301 = scalar_select %p300, %s23, 1
        %s302 = smul.addr %s299, 2
        %s303 = sadd.s32 %s301, %s302
        %s304 = smul.addr %s303, 4
        %s305 = scalar_lea.vmem %s2, %s304
        %p306 = scmp.lt.s32.totalorder %s22, 1
        %s307 = scalar_select %p306, %s22, 1
        %p308 = scmp.lt.s32.totalorder %s23, 1
        %s309 = scalar_select %p308, %s23, 1
        %s310 = smul.addr %s307, 4
        %s311 = sadd.s32 %s309, %s310
        %s312 = smul.addr %s311, 8
        %s313 = scalar_lea.vmem %s3, %s312
        %v314 = vld [vmem:[%s289] sm:$0xff]
        %315 = vst [vmem:[%s281] sm:$0xff] %v314
        %v316 = vld [vmem:[%s297] sm:$0xff]
        %v317 = vld [vmem:[%s281] sm:$0xff]
        %v318 = vadd.f32 %v317, %v316
        %319 = vst [vmem:[%s281] sm:$0xff] %v318
        %v320 = vld [vmem:[%s305] sm:$0xf]
        %v321 = vld [vmem:[%s281] sm:$0xf]
        %v322 = vadd.f32 %v321, %v320
        %323 = vst [vmem:[%s281] sm:$0xf] %v322
        %v324 = vld [vmem:[%s313] sm:$0xff]
        %v325 = vld [vmem:[%s281] sm:$0xff]
        %v326 = vadd.f32 %v325, %v324
        %327 = vst [vmem:[%s281] sm:$0xff] %v326
        %s328 = sand.u32 %s152, 1
        %s329 = scalar_lea.sflag [#allocation3], %s328
        %s330 = sand.u32 %s152, 1
        %s331 = smul.addr %s330, 8
        %s332 = scalar_lea.vmem [#allocation2], %s331
        // Predicated region
        $region37: #{tpu_custom_call.1} parent=35 // pred_check
          %p333 = pneg %p162
        $region38: #{tpu_custom_call.1} parent=35 // pred_check_branch
          %335 = sbr.rel (%p333) target = $region40
        $region39: #{tpu_custom_call.1} parent=35 // pred_region
          %s337 = ssub.s32 128, 128
          %338 = vsyncadd %s329, %s337
          %s339 = smul.addr %s22, 2
          %s340 = sadd.s32 %s23, %s339
          %s341 = smul.addr %s340, 128
          %s342 = scalar_lea.hbm %s4, %s341
          %s344 = sshll.u32 %s332, 4
          %s345 = int_to_ptr.vmem [resolvable:$true] %s344
          %347 = dma.vmem_to_hbm [thread:$0]  %s345, 128, %s342, %s329
        $region40: #{tpu_custom_call.1} parent=35 // pred_fallthru
          _
      $region36: #{tpu_custom_call.1} parent=5 // pred_fallthru
        _
      %p348 = scmp.le.s32.totalorder 2, %s13
      // Predicated region
      $region41: #{tpu_custom_call.1} parent=5 // pred_check
        %p349 = pneg %p348
      $region42: #{tpu_custom_call.1} parent=5 // pred_check_branch
        %351 = sbr.rel (%p349) target = $region44
      $region43: #{tpu_custom_call.1} parent=5 // pred_region
        %s352 = ssub.s32 %s13, 2
        // Predicated region
        $region45: #{tpu_custom_call.1} parent=43 // pred_check
          %p353 = pneg %p168
        $region46: #{tpu_custom_call.1} parent=43 // pred_check_branch
          %355 = sbr.rel (%p353) target = $region48
        $region47: #{tpu_custom_call.1} parent=43 // pred_region
          %s356 = sand.u32 %s153, 1
          %s357 = scalar_lea.sflag [#allocation3], %s356
          %s358 = sand.u32 %s153, 1
          %s359 = smul.addr %s358, 8
          %s360 = scalar_lea.vmem [#allocation2], %s359
          %361 = dma.done %s357, 128
        $region48: #{tpu_custom_call.1} parent=43 // pred_fallthru
          _
      $region44: #{tpu_custom_call.1} parent=5 // pred_fallthru
        _
    $region6: #{tpu_custom_call.1} parent=1 // loop_footer
      %s17 = sadd.s32 1, %s13
    $region7: #{tpu_custom_call.1} parent=1 // loop_footer_branch
      %12 = sbr.rel target = $region3
    $region8: #{tpu_custom_call.1} parent=1 // loop_exit
      _
    %362 = vsyncpa [#allocation3], 1
    %s363 = scalar_lea.sflag [#allocation3], 1
    %364 = vsyncpa %s363, 1

</llo_original>
